<compile_context>
chip_gen: v7x
topology: tpu7x:2x2x1
jax: 0.10.0
libtpu: 0.0.40
codegen_flags: <defaults>
</compile_context>

<pallas_src>
import functools
from typing import NamedTuple

import jax
import jax.numpy as jnp
from jax.experimental import pallas as pl
from jax.experimental.pallas import tpu as pltpu


def _round_up(x, m):
    return (x + m - 1) // m * m


def _itemsize(dt):
    return jnp.dtype(dt).itemsize


class PackedActorParams(NamedTuple):
    """Padded, kernel-ready parameter slabs (build once, reuse every call)."""
    w1: jax.Array        # (states_dim, d_pad)  compute dtype (fc1, exact K)
    w_hidden: jax.Array  # (3, d_pad, d_pad)    compute dtype (fc2, fc3, fc4)
    b: jax.Array         # (4, 1, d_pad)        float32
    states_dim: int
    hidden_dim: int
    action_dim: int
    d_pad: int


def pack_actor_params(params, *, compute_dtype=jnp.bfloat16):
    """Pack/zero-pad the 8 Linear tensors into 3 kernel operands.

    Zero-padded output columns of fc1 + zero-padded bias entries keep the
    padded activation lanes exactly 0 through the ReLU stack, so the
    zero-padded rows/cols of fc2..fc4 are numerically exact.
    """
    states_dim, hidden_dim = params["w1"].shape
    action_dim = params["w4"].shape[1]
    d_pad = _round_up(max(hidden_dim, action_dim), 128)

    w1 = jnp.zeros((states_dim, d_pad), compute_dtype)
    w1 = w1.at[:, :hidden_dim].set(params["w1"].astype(compute_dtype))

    def pad_hidden(w):
        out = jnp.zeros((d_pad, d_pad), compute_dtype)
        return out.at[:w.shape[0], :w.shape[1]].set(w.astype(compute_dtype))

    w_hidden = jnp.stack([pad_hidden(params[f"w{i}"]) for i in (2, 3, 4)])

    def pad_b(b):
        b = jnp.asarray(b, jnp.float32).reshape(1, -1)
        out = jnp.zeros((1, d_pad), jnp.float32)
        return out.at[:, :b.shape[1]].set(b)

    b = jnp.stack([pad_b(params[f"b{i}"]) for i in range(1, 5)])

    return PackedActorParams(w1, w_hidden, b,
                             states_dim, hidden_dim, action_dim, d_pad)


def actor_kernel(x_ref, w1_ref, wh_ref, b_ref, o_ref, *, max_action):
    """Fused 4-layer MLP on one (TB, ...) batch tile.

    x_ref : (TB, S)     input tile, native dtype / native feature width
    w1_ref: (S, D)      fc1 weight, compute dtype (exact K, no padding)
    wh_ref: (3, D, D)   fc2..fc4 weights, compute dtype (VMEM-resident)
    b_ref : (4, 1, D)   biases, f32
    o_ref : (TB, D)     lane-dense output slab
    """
    cdt = w1_ref.dtype  # compute (MXU) dtype; accumulation is always f32.

    # fc1: native-K matmul (no feature padding on x), f32 accumulate.
    h = jnp.dot(x_ref[...].astype(cdt), w1_ref[...],
                preferred_element_type=jnp.float32) + b_ref[0]
    h = jnp.maximum(h, 0.0)

    # fc2, fc3: relu(h @ W + b); MXU in compute dtype, elementwise stays f32
    # (v5e VPU/EUP have no bf16 — keep bias/ReLU/tanh in f32 on every chip).
    for i in range(2):
        y = jnp.dot(h.astype(cdt), wh_ref[i],
                    preferred_element_type=jnp.float32) + b_ref[i + 1]
        h = jnp.maximum(y, 0.0)

    # fc4 head: max_action * tanh(.); max_action is a compile-time constant.
    y = jnp.dot(h.astype(cdt), wh_ref[2],
                preferred_element_type=jnp.float32) + b_ref[3]
    o_ref[...] = (max_action * jnp.tanh(y)).astype(o_ref.dtype)


def _default_num_batch_blocks():
    """grid=1 on single-TC chips (v5e/v6e); 2 on v7x to use both TensorCores."""
    try:
        kind = jax.devices()[0].device_kind.lower()
    except Exception:  # pragma: no cover - defensive
        kind = ""
    return 2 if ("v7" in kind or "7x" in kind) else 1


def actor_forward(x, packed: PackedActorParams, max_action, *,
                  out_dtype=jnp.float32, num_batch_blocks=None,
                  max_block_batch=4096):
    """max_action * tanh(relu(relu(relu(x@W1+b1)@W2+b2)@W3+b3)@W4+b4)."""
    batch, states_dim = x.shape
    assert states_dim == packed.states_dim, "x feature dim mismatch"
    d_pad = packed.d_pad
    cdt = packed.w1.dtype

    # ---- batch tiling ------------------------------------------------------
    # Sublane multiple: 16 if any 16-bit dtype is in play, else 8.  tb is
    # always clamped to this multiple (fixes the block_batch=100-style hazard).
    sub = 16 if 2 in (_itemsize(cdt), _itemsize(out_dtype), _itemsize(x.dtype)) else 8
    if num_batch_blocks is None:
        num_batch_blocks = _default_num_batch_blocks()
    rows_per_block = -(-batch // max(num_batch_blocks, 1))
    tb = _round_up(rows_per_block, sub)
    tb = min(tb, _round_up(max_block_batch, sub))   # VMEM safety cap
    b_pad = _round_up(batch, tb)
    grid = (b_pad // tb,)

    # Pad only the batch axis, and only when needed (feature axis stays native).
    if b_pad != batch:
        x_in = jnp.zeros((b_pad, states_dim), x.dtype).at[:batch].set(x)
    else:
        x_in = x

    # ---- VMEM budget: set an explicit limit only when defaults could be tight.
    est_vmem = (2 * tb * states_dim * _itemsize(x.dtype)               # x tiles (2 bufs)
                + 2 * tb * d_pad * _itemsize(out_dtype)                # out tiles (2 bufs)
                + 2 * (states_dim + 3 * d_pad) * d_pad * _itemsize(cdt)  # weights (2 bufs)
                + 2 * 4 * d_pad * 4)                                   # biases
    vmem_limit = None
    if est_vmem > 12 * (1 << 20):
        # TODO(synk): for very large hidden widths, K/N-tile the hidden-weight
        # slab and single-buffer the grid-invariant operands (pl.Buffered(1))
        # to fit v7x's 64 MiB VMEM; not needed at these sizes.
        vmem_limit = int(min(2 * est_vmem, 64 * (1 << 20)))

    kernel = functools.partial(actor_kernel, max_action=float(max_action))

    out_padded = pl.pallas_call(
        kernel,
        out_shape=jax.ShapeDtypeStruct((b_pad, d_pad), out_dtype),
        grid=grid,
        in_specs=[
            pl.BlockSpec((tb, states_dim), lambda i: (i, 0)),       # x tile (native K)
            pl.BlockSpec((states_dim, d_pad), lambda i: (0, 0)),    # fc1 W (resident)
            pl.BlockSpec((3, d_pad, d_pad), lambda i: (0, 0, 0)),   # fc2..4 W (resident)
            pl.BlockSpec((4, 1, d_pad), lambda i: (0, 0, 0)),       # biases (resident)
        ],
        out_specs=pl.BlockSpec((tb, d_pad), lambda i: (i, 0)),      # lane-dense slab
        compiler_params=pltpu.CompilerParams(
            dimension_semantics=("parallel",),
            vmem_limit_bytes=vmem_limit),
    )(x_in, packed.w1, packed.w_hidden, packed.b)

    # Padded rows/lanes of the slab are not meaningful — this slice is mandatory.
    return out_padded[:batch, :packed.action_dim]


def init_actor_params(key, states_dim, action_dim, hidden_dim):
    """Deterministic init mimicking nn.Linear's U(-1/sqrt(fan_in), 1/sqrt(fan_in))."""
    dims = [(states_dim, hidden_dim),
            (hidden_dim, hidden_dim),
            (hidden_dim, hidden_dim),
            (hidden_dim, action_dim)]
    params = {}
    for i, (fan_in, fan_out) in enumerate(dims, start=1):
        key, kw, kb = jax.random.split(key, 3)
        bound = 1.0 / jnp.sqrt(jnp.asarray(fan_in, jnp.float32))
        params[f"w{i}"] = jax.random.uniform(
            kw, (fan_in, fan_out), jnp.float32, -bound, bound)
        params[f"b{i}"] = jax.random.uniform(
            kb, (1, fan_out), jnp.float32, -bound, bound)
    return params


def actor_reference(x, params, max_action):
    h = jnp.maximum(x @ params["w1"] + params["b1"], 0.0)
    h = jnp.maximum(h @ params["w2"] + params["b2"], 0.0)
    h = jnp.maximum(h @ params["w3"] + params["b3"], 0.0)
    return max_action * jnp.tanh(h @ params["w4"] + params["b4"])


if __name__ == "__main__":
    key = jax.random.PRNGKey(0)

    batch = 8
    states_dim = 16
    action_dim = 4
    hidden_dim = 32
    max_action = 2.0

    key, kx, kp = jax.random.split(key, 3)
    x = jax.random.normal(kx, (batch, states_dim), jnp.float32)
    params = init_actor_params(kp, states_dim, action_dim, hidden_dim)
    ref = actor_reference(x, params, max_action)

    # Packing happens ONCE; every forward call below reuses the same slabs.
    packed_bf16 = pack_actor_params(params)                           # default bf16 MXU path
    packed_f32 = pack_actor_params(params, compute_dtype=jnp.float32)

    # Default (bf16-into-MXU, f32 accumulate/elementwise) path.
    out = jax.block_until_ready(actor_forward(x, packed_bf16, max_action))
    assert out.shape == (batch, action_dim)
    assert out.dtype == jnp.float32
    assert jnp.allclose(out, ref, atol=2e-2, rtol=2e-2), "bf16 mismatch vs reference"

    # Full-f32 MXU path (exact up to fp rounding).
    out_f32 = jax.block_until_ready(actor_forward(x, packed_f32, max_action))
    assert jnp.allclose(out_f32, ref, atol=1e-5, rtol=1e-5), "f32 mismatch vs reference"

    # Larger, non-multiple batch + forced 2-way batch split (v7x-style grid).
    key, kx2 = jax.random.split(key)
    x2 = jax.random.normal(kx2, (300, states_dim), jnp.float32)
    ref2 = actor_reference(x2, params, max_action)
    out2 = jax.block_until_ready(
        actor_forward(x2, packed_f32, max_action, num_batch_blocks=2))
    assert out2.shape == (300, action_dim)
    assert jnp.allclose(out2, ref2, atol=1e-5, rtol=1e-5), "gridded f32 mismatch"

    # bf16 MXU path with bf16 output slab (halved output writeback bytes).
    out2_bf16 = jax.block_until_ready(
        actor_forward(x2, packed_bf16, max_action, out_dtype=jnp.bfloat16))
    assert out2_bf16.shape == (300, action_dim)
    assert out2_bf16.dtype == jnp.bfloat16
    assert jnp.allclose(out2_bf16.astype(jnp.float32), ref2,
                        atol=5e-2, rtol=5e-2), "bf16-out mismatch vs reference"

    print("KERNEL_OK")
</pallas_src>

<mosaic_0001>
module attributes {stable_mosaic.version = 11 : i64} {
  func.func @actor_kernel(%arg0: i32, %arg1: memref<16x16xf32, #tpu.memory_space<vmem>>, %arg2: memref<16x128xbf16, #tpu.memory_space<vmem>>, %arg3: memref<3x128x128xbf16, #tpu.memory_space<vmem>>, %arg4: memref<4x1x128xf32, #tpu.memory_space<vmem>>, %arg5: memref<16x128xf32, #tpu.memory_space<vmem>>) attributes {dimension_semantics = [#tpu.dimension_semantics<parallel>], iteration_bounds = array<i64: 1>, scalar_prefetch = 0 : i64, scratch_operands = 0 : i64, tpu.core_type = #tpu.core_type<tc>, window_params = [{transform_indices = @transform_0, window_bounds = array<i64: 16, 16>}, {pipeline_mode = #tpu.pipeline_mode<synchronous>, transform_indices = @transform_1, window_bounds = array<i64: 16, 128>}, {pipeline_mode = #tpu.pipeline_mode<synchronous>, transform_indices = @transform_2, window_bounds = array<i64: 3, 128, 128>}, {pipeline_mode = #tpu.pipeline_mode<synchronous>, transform_indices = @transform_3, window_bounds = array<i64: 4, 1, 128>}, {transform_indices = @transform_4, window_bounds = array<i64: 16, 128>}]} {
    %c0 = arith.constant 0 : index
    %c0_0 = arith.constant 0 : index
    %0 = vector.load %arg1[%c0, %c0_0] : memref<16x16xf32, #tpu.memory_space<vmem>>, vector<16x16xf32>
    %1 = arith.truncf %0 : vector<16x16xf32> to vector<16x16xbf16>
    %c0_1 = arith.constant 0 : index
    %c0_2 = arith.constant 0 : index
    %2 = vector.load %arg2[%c0_1, %c0_2] : memref<16x128xbf16, #tpu.memory_space<vmem>>, vector<16x128xbf16>
    %cst = arith.constant dense<0.000000e+00> : vector<16x128xf32>
    %3 = tpu.matmul %1, %2, %cst {dimension_numbers = #tpu.dot_dimension_numbers<[1], [0], [0], [1], [0, 0, 1, 1], [], []>} : vector<16x16xbf16>, vector<16x128xbf16>, vector<16x128xf32> -> vector<16x128xf32>
    %c0_3 = arith.constant 0 : index
    %c0_4 = arith.constant 0 : index
    %c0_5 = arith.constant 0 : index
    %4 = vector.load %arg4[%c0_3, %c0_4, %c0_5] : memref<4x1x128xf32, #tpu.memory_space<vmem>>, vector<1x1x128xf32>
    %5 = vector.shape_cast %4 : vector<1x1x128xf32> to vector<1x128xf32>
    %6 = vector.broadcast %5 : vector<1x128xf32> to vector<16x128xf32>
    %7 = arith.addf %3, %6 : vector<16x128xf32>
    %cst_6 = arith.constant 0.000000e+00 : f32
    %8 = vector.broadcast %cst_6 : f32 to vector<16x128xf32>
    %9 = arith.maximumf %7, %8 : vector<16x128xf32>
    %10 = arith.truncf %9 : vector<16x128xf32> to vector<16x128xbf16>
    %c0_7 = arith.constant 0 : index
    %c0_8 = arith.constant 0 : index
    %c0_9 = arith.constant 0 : index
    %11 = vector.load %arg3[%c0_7, %c0_8, %c0_9] : memref<3x128x128xbf16, #tpu.memory_space<vmem>>, vector<1x128x128xbf16>
    %12 = vector.shape_cast %11 : vector<1x128x128xbf16> to vector<128x128xbf16>
    %cst_10 = arith.constant dense<0.000000e+00> : vector<16x128xf32>
    %13 = tpu.matmul %10, %12, %cst_10 {dimension_numbers = #tpu.dot_dimension_numbers<[1], [0], [0], [1], [0, 0, 1, 1], [], []>} : vector<16x128xbf16>, vector<128x128xbf16>, vector<16x128xf32> -> vector<16x128xf32>
    %c1 = arith.constant 1 : index
    %c0_11 = arith.constant 0 : index
    %c0_12 = arith.constant 0 : index
    %14 = vector.load %arg4[%c1, %c0_11, %c0_12] : memref<4x1x128xf32, #tpu.memory_space<vmem>>, vector<1x1x128xf32>
    %15 = vector.shape_cast %14 : vector<1x1x128xf32> to vector<1x128xf32>
    %16 = vector.broadcast %15 : vector<1x128xf32> to vector<16x128xf32>
    %17 = arith.addf %13, %16 : vector<16x128xf32>
    %cst_13 = arith.constant 0.000000e+00 : f32
    %18 = vector.broadcast %cst_13 : f32 to vector<16x128xf32>
    %19 = arith.maximumf %17, %18 : vector<16x128xf32>
    %20 = arith.truncf %19 : vector<16x128xf32> to vector<16x128xbf16>
    %c1_14 = arith.constant 1 : index
    %c0_15 = arith.constant 0 : index
    %c0_16 = arith.constant 0 : index
    %21 = vector.load %arg3[%c1_14, %c0_15, %c0_16] : memref<3x128x128xbf16, #tpu.memory_space<vmem>>, vector<1x128x128xbf16>
    %22 = vector.shape_cast %21 : vector<1x128x128xbf16> to vector<128x128xbf16>
    %cst_17 = arith.constant dense<0.000000e+00> : vector<16x128xf32>
    %23 = tpu.matmul %20, %22, %cst_17 {dimension_numbers = #tpu.dot_dimension_numbers<[1], [0], [0], [1], [0, 0, 1, 1], [], []>} : vector<16x128xbf16>, vector<128x128xbf16>, vector<16x128xf32> -> vector<16x128xf32>
    %c2 = arith.constant 2 : index
    %c0_18 = arith.constant 0 : index
    %c0_19 = arith.constant 0 : index
    %24 = vector.load %arg4[%c2, %c0_18, %c0_19] : memref<4x1x128xf32, #tpu.memory_space<vmem>>, vector<1x1x128xf32>
    %25 = vector.shape_cast %24 : vector<1x1x128xf32> to vector<1x128xf32>
    %26 = vector.broadcast %25 : vector<1x128xf32> to vector<16x128xf32>
    %27 = arith.addf %23, %26 : vector<16x128xf32>
    %cst_20 = arith.constant 0.000000e+00 : f32
    %28 = vector.broadcast %cst_20 : f32 to vector<16x128xf32>
    %29 = arith.maximumf %27, %28 : vector<16x128xf32>
    %30 = arith.truncf %29 : vector<16x128xf32> to vector<16x128xbf16>
    %c2_21 = arith.constant 2 : index
    %c0_22 = arith.constant 0 : index
    %c0_23 = arith.constant 0 : index
    %31 = vector.load %arg3[%c2_21, %c0_22, %c0_23] : memref<3x128x128xbf16, #tpu.memory_space<vmem>>, vector<1x128x128xbf16>
    %32 = vector.shape_cast %31 : vector<1x128x128xbf16> to vector<128x128xbf16>
    %cst_24 = arith.constant dense<0.000000e+00> : vector<16x128xf32>
    %33 = tpu.matmul %30, %32, %cst_24 {dimension_numbers = #tpu.dot_dimension_numbers<[1], [0], [0], [1], [0, 0, 1, 1], [], []>} : vector<16x128xbf16>, vector<128x128xbf16>, vector<16x128xf32> -> vector<16x128xf32>
    %c3 = arith.constant 3 : index
    %c0_25 = arith.constant 0 : index
    %c0_26 = arith.constant 0 : index
    %34 = vector.load %arg4[%c3, %c0_25, %c0_26] : memref<4x1x128xf32, #tpu.memory_space<vmem>>, vector<1x1x128xf32>
    %35 = vector.shape_cast %34 : vector<1x1x128xf32> to vector<1x128xf32>
    %36 = vector.broadcast %35 : vector<1x128xf32> to vector<16x128xf32>
    %37 = arith.addf %33, %36 : vector<16x128xf32>
    %38 = math.tanh %37 : vector<16x128xf32>
    %cst_27 = arith.constant 2.000000e+00 : f32
    %39 = vector.broadcast %cst_27 : f32 to vector<16x128xf32>
    %40 = arith.mulf %39, %38 : vector<16x128xf32>
    %c0_28 = arith.constant 0 : index
    %c0_29 = arith.constant 0 : index
    %41 = vector.load %arg5[%c0_28, %c0_29] : memref<16x128xf32, #tpu.memory_space<vmem>>, vector<16x128xf32>
    tpu.vector_store %arg5[%c0_28, %c0_29], %40 {strides = array<i32>} : memref<16x128xf32, #tpu.memory_space<vmem>>, vector<16x128xf32>,
    return
  }
  func.func @transform_0(%arg0: i32) -> (i32, i32) {
    %c0_i32 = arith.constant 0 : i32
    %c0_i32_0 = arith.constant 0 : i32
    return %arg0, %c0_i32 : i32, i32
  }
  func.func @transform_1(%arg0: i32) -> (i32, i32) {
    %c0_i32 = arith.constant 0 : i32
    %c0_i32_0 = arith.constant 0 : i32
    %c0_i32_1 = arith.constant 0 : i32
    return %c0_i32, %c0_i32_0 : i32, i32
  }
  func.func @transform_2(%arg0: i32) -> (i32, i32, i32) {
    %c0_i32 = arith.constant 0 : i32
    %c0_i32_0 = arith.constant 0 : i32
    %c0_i32_1 = arith.constant 0 : i32
    %c0_i32_2 = arith.constant 0 : i32
    return %c0_i32, %c0_i32_0, %c0_i32_1 : i32, i32, i32
  }
  func.func @transform_3(%arg0: i32) -> (i32, i32, i32) {
    %c0_i32 = arith.constant 0 : i32
    %c0_i32_0 = arith.constant 0 : i32
    %c0_i32_1 = arith.constant 0 : i32
    %c0_i32_2 = arith.constant 0 : i32
    return %c0_i32, %c0_i32_0, %c0_i32_1 : i32, i32, i32
  }
  func.func @transform_4(%arg0: i32) -> (i32, i32) {
    %c0_i32 = arith.constant 0 : i32
    %c0_i32_0 = arith.constant 0 : i32
    return %arg0, %c0_i32 : i32, i32
  }
}

</mosaic_0001>

<llo_original>
// kernel: tpu_custom_call.1
$region0: #{tpu_custom_call.1}
  #allocation0 [shape = 'u32[]', space=smem, size = 0x4, offset = 0x4, fixed_abs, tag = 'smem constant byte address 0x4 - core index']
  #allocation1 [shape = 'u32[144,128]{1,0:T(1,128)}', space=vmem, size = 0x12000, scoped, tag = 'internal scratch']
  %s0 = inlined_call_operand.hbm [shape: f32[16,16], index: 0, kind: input, shape index: {}]
  %s1 = inlined_call_operand.hbm [shape: bf16[16,128], index: 1, kind: input, shape index: {}]
  %s2 = inlined_call_operand.hbm [shape: bf16[3,128,128], index: 2, kind: input, shape index: {}]
  %s3 = inlined_call_operand.vmem [shape: f32[4,1,128], index: 3, kind: input, shape index: {}]
  %s4 = inlined_call_operand.hbm [shape: f32[16,128], index: 4, kind: output, shape index: {}]
  %s5 = sld [smem:[#allocation0]]
  $region38: #{tpu_custom_call.1} parent=0
    _
  %s7 = ssub.s32 1, %s5
  %s8 = scalar_select 0, %s7, %s5
  $region1: #{tpu_custom_call.1} parent=0
    #allocation2 [shape = 'u8[8192]{0}', space=vmem, size = 0x2000, scoped, tag = 'input window, operand 0, single buffered']
    #allocation3 [shape = 's32[1]{0}', space=sflag, size = 0x4, scoped, tag = 'scoped memory for tpu_custom_call.1']
    #allocation4 [shape = 's32[1]{0}', space=sflag, size = 0x4, scoped, tag = 'scoped memory for tpu_custom_call.1']
    #allocation5 [shape = 'u8[4096]{0}', space=vmem, size = 0x1000, scoped, tag = 'input window, operand 1, single buffered']
    #allocation6 [shape = 's32[1]{0}', space=sflag, size = 0x4, scoped, tag = 'scoped memory for tpu_custom_call.1']
    #allocation7 [shape = 'u8[98304]{0}', space=vmem, size = 0x18000, scoped, tag = 'input window, operand 2, single buffered']
    #allocation8 [shape = 'u8[8192]{0}', space=vmem, size = 0x2000, scoped, tag = 'output window, operand 0, single buffered']
    %9 = vsyncpa [#allocation3], 0
    %10 = vsyncpa [#allocation6], 0
    %11 = vsyncpa [#allocation4], 0
    // Predicated region
    $region2: #{tpu_custom_call.1} parent=1 // pred_check
      _
    $region3: #{tpu_custom_call.1} parent=1 // pred_check_branch
      %13 = sbr.rel (0) target = $region5
    $region4: #{tpu_custom_call.1} parent=1 // pred_region
      %s15 = ssub.s32 256, 256
      %16 = vsyncadd [#allocation3], %s15
      %s17 = sshll.u32 [#allocation2], 4
      %s18 = int_to_ptr.vmem [resolvable:$true] %s17
      %23 = dma.hbm_to_vmem [thread:$0]  %s0, 256, %s18, [#allocation3], 128, 128, 8
    $region5: #{tpu_custom_call.1} parent=1 // pred_fallthru
      _
    // Predicated region
    $region6: #{tpu_custom_call.1} parent=1 // pred_check
      _
    $region7: #{tpu_custom_call.1} parent=1 // pred_check_branch
      %25 = sbr.rel (0) target = $region9
    $region8: #{tpu_custom_call.1} parent=1 // pred_region
      %s27 = ssub.s32 128, 128
      %28 = vsyncadd [#allocation6], %s27
      %s29 = sshll.u32 [#allocation5], 4
      %s30 = int_to_ptr.vmem [resolvable:$true] %s29
      %35 = dma.hbm_to_vmem [thread:$0]  %s1, 128, %s30, [#allocation6], 64, 64, 4
    $region9: #{tpu_custom_call.1} parent=1 // pred_fallthru
      _
    // Predicated region
    $region10: #{tpu_custom_call.1} parent=1 // pred_check
      _
    $region11: #{tpu_custom_call.1} parent=1 // pred_check_branch
      %37 = sbr.rel (0) target = $region13
    $region12: #{tpu_custom_call.1} parent=1 // pred_region
      %s39 = ssub.s32 3072, 3072
      %40 = vsyncadd [#allocation6], %s39
      %s41 = sshll.u32 [#allocation7], 4
      %s42 = int_to_ptr.vmem [resolvable:$true] %s41
      %47 = dma.hbm_to_vmem [thread:$0]  %s2, 3072, %s42, [#allocation6], 64, 64, 4
    $region13: #{tpu_custom_call.1} parent=1 // pred_fallthru
      _
    // Predicated region
    $region14: #{tpu_custom_call.1} parent=1 // pred_check
      _
    $region15: #{tpu_custom_call.1} parent=1 // pred_check_branch
      %49 = sbr.rel (0) target = $region17
    $region16: #{tpu_custom_call.1} parent=1 // pred_region
      _
    $region17: #{tpu_custom_call.1} parent=1 // pred_fallthru
      _
    // Predicated region
    $region18: #{tpu_custom_call.1} parent=1 // pred_check
      _
    $region19: #{tpu_custom_call.1} parent=1 // pred_check_branch
      %51 = sbr.rel (0) target = $region21
    $region20: #{tpu_custom_call.1} parent=1 // pred_region
      %52 = dma.done [#allocation3], 256
    $region21: #{tpu_custom_call.1} parent=1 // pred_fallthru
      _
    // Predicated region
    $region22: #{tpu_custom_call.1} parent=1 // pred_check
      _
    $region23: #{tpu_custom_call.1} parent=1 // pred_check_branch
      %54 = sbr.rel (0) target = $region25
    $region24: #{tpu_custom_call.1} parent=1 // pred_region
      %55 = dma.done [#allocation6], 128
    $region25: #{tpu_custom_call.1} parent=1 // pred_fallthru
      _
    // Predicated region
    $region26: #{tpu_custom_call.1} parent=1 // pred_check
      _
    $region27: #{tpu_custom_call.1} parent=1 // pred_check_branch
      %57 = sbr.rel (0) target = $region29
    $region28: #{tpu_custom_call.1} parent=1 // pred_region
      %58 = dma.done [#allocation6], 3072
    $region29: #{tpu_custom_call.1} parent=1 // pred_fallthru
      _
    %v60 = vld [vmem:[#allocation2] sm:$0xff]
    %v61 = vld [vmem:[#allocation2 + $0x8] sm:$0xff]
    %v62 = vpack.c.bf16 %v61, %v60
    %v63 = vld [vmem:[#allocation5] sm:$0xf]
    %v64 = vld [vmem:[#allocation5 + $0x4] sm:$0xf]
    %v65 = vld [vmem:[%s3] sm:$0x1]
    %v67 = vlaneseq
    %v68 = vshrl.u32 %v67, 7
    %v69 = vsub.s32 0, %v68
    %v70 = vrot.slane %v65, %v69
    %v74 = vunpack.c.l.b16 %v63
    %v75 = vunpack.c.l.b16 %v64
    %v76 = vpack.c.b16 %v75, %v74
    %vm78 = vcmask 130048
    %v80 = vsel %vm78, %v62, 0
    %82 = vmatprep.subr.bf16.mxu0 0
    %83 = vmatpush1.bf16.msra.mxu0 %v76
    %84 = vmatprep.subr.bf16.mxu0 0
    %85 = vmatpush1.bf16.msra.mxu0 0
    %86 = vmatprep.subr.bf16.mxu0 0
    %87 = vmatpush1.bf16.msra.mxu0 0
    %88 = vmatprep.subr.bf16.mxu0 0
    %89 = vmatpush1.bf16.msra.mxu0 0
    %90 = vmatprep.subr.bf16.mxu0 0
    %91 = vmatpush1.bf16.msra.mxu0 0
    %92 = vmatprep.subr.bf16.mxu0 0
    %93 = vmatpush1.bf16.msra.mxu0 0
    %94 = vmatprep.subr.bf16.mxu0 0
    %95 = vmatpush1.bf16.msra.mxu0 0
    %96 = vmatprep.subr.bf16.mxu0 0
    %97 = vmatpush1.bf16.msra.mxu0 0
    %98 = vmatprep.subr.bf16.mxu0 0
    %99 = vmatpush1.bf16.msra.mxu0 0
    %100 = vmatprep.subr.bf16.mxu0 0
    %101 = vmatpush1.bf16.msra.mxu0 0
    %102 = vmatprep.subr.bf16.mxu0 0
    %103 = vmatpush1.bf16.msra.mxu0 0
    %104 = vmatprep.subr.bf16.mxu0 0
    %105 = vmatpush1.bf16.msra.mxu0 0
    %106 = vmatprep.subr.bf16.mxu0 0
    %107 = vmatpush1.bf16.msra.mxu0 0
    %108 = vmatprep.subr.bf16.mxu0 0
    %109 = vmatpush1.bf16.msra.mxu0 0
    %110 = vmatprep.subr.bf16.mxu0 0
    %111 = vmatpush1.bf16.msra.mxu0 0
    %112 = vmatprep.subr.bf16.mxu0 0
    %113 = vmatpush1.bf16.msra.mxu0 0
    %114 = vmatprep.mubr.bf16.mxu0 0
    %115 = vmatmul.mubr.bf16.gmra.mrb[0].mxu0 %v80
    %v116 = vpop.f32.mrb[0].mxu0
    %v117 = vadd.f32 %v70, %v116
    %v118 = vpop.f32.mrb[0].mxu0
    %v119 = vpop.f32.mrb[0].mxu0
    %v120 = vadd.f32 %v70, %v119
    %v121 = vpop.f32.mrb[0].mxu0
    %122 = vdwg.mxu0
    %v123 = vmax.f32 %v117, 0.0
    %v124 = vmax.f32 %v120, 0.0
    %v125 = vpack.c.bf16 %v124, %v123
    %v126 = vld [vmem:[#allocation7] sm:$0xf]
    %v127 = vld [vmem:[#allocation7 + $0x4] sm:$0xf]
    %v128 = vld [vmem:[#allocation7 + $0x8] sm:$0xf]
    %v129 = vld [vmem:[#allocation7 + $0xc] sm:$0xf]
    %v130 = vld [vmem:[#allocation7 + $0x10] sm:$0xf]
    %v131 = vld [vmem:[#allocation7 + $0x14] sm:$0xf]
    %v132 = vld [vmem:[#allocation7 + $0x18] sm:$0xf]
    %v133 = vld [vmem:[#allocation7 + $0x1c] sm:$0xf]
    %v134 = vld [vmem:[#allocation7 + $0x20] sm:$0xf]
    %v135 = vld [vmem:[#allocation7 + $0x24] sm:$0xf]
    %v136 = vld [vmem:[#allocation7 + $0x28] sm:$0xf]
    %v137 = vld [vmem:[#allocation7 + $0x2c] sm:$0xf]
    %v138 = vld [vmem:[#allocation7 + $0x30] sm:$0xf]
    %v139 = vld [vmem:[#allocation7 + $0x34] sm:$0xf]
    %v140 = vld [vmem:[#allocation7 + $0x38] sm:$0xf]
    %v141 = vld [vmem:[#allocation7 + $0x3c] sm:$0xf]
    %s142 = scalar_lea.vmem %s3, 1
    %v143 = vld [vmem:[%s142] sm:$0x1]
    %v145 = vlaneseq
    %v146 = vshrl.u32 %v145, 7
    %v147 = vsub.s32 0, %v146
    %v148 = vrot.slane %v143, %v147
    %v166 = vunpack.c.l.b16 %v126
    %v167 = vunpack.c.l.b16 %v127
    %v168 = vunpack.c.l.b16 %v128
    %v169 = vunpack.c.l.b16 %v129
    %v170 = vunpack.c.l.b16 %v130
    %v171 = vunpack.c.l.b16 %v131
    %v172 = vunpack.c.l.b16 %v132
    %v173 = vunpack.c.l.b16 %v133
    %v174 = vunpack.c.l.b16 %v134
    %v175 = vunpack.c.l.b16 %v135
    %v176 = vunpack.c.l.b16 %v136
    %v177 = vunpack.c.l.b16 %v137
    %v178 = vunpack.c.l.b16 %v138
    %v179 = vunpack.c.l.b16 %v139
    %v180 = vunpack.c.l.b16 %v140
    %v181 = vunpack.c.l.b16 %v141
    %v182 = vpack.c.b16 %v167, %v166
    %v183 = vpack.c.b16 %v169, %v168
    %v184 = vpack.c.b16 %v171, %v170
    %v185 = vpack.c.b16 %v173, %v172
    %v186 = vpack.c.b16 %v175, %v174
    %v187 = vpack.c.b16 %v177, %v176
    %v188 = vpack.c.b16 %v179, %v178
    %v189 = vpack.c.b16 %v181, %v180
    %198 = vmatprep.subr.bf16.mxu0 0
    %199 = vmatpush1.bf16.msra.mxu0 %v182
    %200 = vmatprep.subr.bf16.mxu0 0
    %201 = vmatpush1.bf16.msra.mxu0 %v183
    %202 = vmatprep.subr.bf16.mxu0 0
    %203 = vmatpush1.bf16.msra.mxu0 %v184
    %204 = vmatprep.subr.bf16.mxu0 0
    %205 = vmatpush1.bf16.msra.mxu0 %v185
    %206 = vmatprep.subr.bf16.mxu0 0
    %207 = vmatpush1.bf16.msra.mxu0 %v186
    %208 = vmatprep.subr.bf16.mxu0 0
    %209 = vmatpush1.bf16.msra.mxu0 %v187
    %210 = vmatprep.subr.bf16.mxu0 0
    %211 = vmatpush1.bf16.msra.mxu0 %v188
    %212 = vmatprep.subr.bf16.mxu0 0
    %213 = vmatpush1.bf16.msra.mxu0 %v189
    %214 = vmatprep.subr.bf16.mxu0 0
    %215 = vmatpush1.bf16.msra.mxu0 0
    %216 = vmatprep.subr.bf16.mxu0 0
    %217 = vmatpush1.bf16.msra.mxu0 0
    %218 = vmatprep.subr.bf16.mxu0 0
    %219 = vmatpush1.bf16.msra.mxu0 0
    %220 = vmatprep.subr.bf16.mxu0 0
    %221 = vmatpush1.bf16.msra.mxu0 0
    %222 = vmatprep.subr.bf16.mxu0 0
    %223 = vmatpush1.bf16.msra.mxu0 0
    %224 = vmatprep.subr.bf16.mxu0 0
    %225 = vmatpush1.bf16.msra.mxu0 0
    %226 = vmatprep.subr.bf16.mxu0 0
    %227 = vmatpush1.bf16.msra.mxu0 0
    %228 = vmatprep.subr.bf16.mxu0 0
    %229 = vmatpush1.bf16.msra.mxu0 0
    %230 = vmatprep.mubr.bf16.mxu0 0
    %231 = vmatmul.mubr.bf16.gmra.mrb[0].mxu0 %v125
    %v232 = vpop.f32.mrb[0].mxu0
    %v233 = vadd.f32 %v148, %v232
    %v234 = vpop.f32.mrb[0].mxu0
    %v235 = vpop.f32.mrb[0].mxu0
    %v236 = vadd.f32 %v148, %v235
    %v237 = vpop.f32.mrb[0].mxu0
    %238 = vdwg.mxu0
    %v239 = vmax.f32 %v233, 0.0
    %v240 = vmax.f32 %v236, 0.0
    %v241 = vpack.c.bf16 %v240, %v239
    %s242 = scalar_lea.vmem [#allocation7], 64
    %v243 = vld [vmem:[%s242] sm:$0xf]
    %v244 = vld [vmem:[%s242 + $0x4] sm:$0xf]
    %v245 = vld [vmem:[%s242 + $0x8] sm:$0xf]
    %v246 = vld [vmem:[%s242 + $0xc] sm:$0xf]
    %v247 = vld [vmem:[%s242 + $0x10] sm:$0xf]
    %v248 = vld [vmem:[%s242 + $0x14] sm:$0xf]
    %v249 = vld [vmem:[%s242 + $0x18] sm:$0xf]
    %v250 = vld [vmem:[%s242 + $0x1c] sm:$0xf]
    %v251 = vld [vmem:[%s242 + $0x20] sm:$0xf]
    %v252 = vld [vmem:[%s242 + $0x24] sm:$0xf]
    %v253 = vld [vmem:[%s242 + $0x28] sm:$0xf]
    %v254 = vld [vmem:[%s242 + $0x2c] sm:$0xf]
    %v255 = vld [vmem:[%s242 + $0x30] sm:$0xf]
    %v256 = vld [vmem:[%s242 + $0x34] sm:$0xf]
    %v257 = vld [vmem:[%s242 + $0x38] sm:$0xf]
    %v258 = vld [vmem:[%s242 + $0x3c] sm:$0xf]
    %s259 = scalar_lea.vmem %s3, 2
    %v260 = vld [vmem:[%s259] sm:$0x1]
    %v262 = vlaneseq
    %v263 = vshrl.u32 %v262, 7
    %v264 = vsub.s32 0, %v263
    %v265 = vrot.slane %v260, %v264
    %v283 = vunpack.c.l.b16 %v243
    %v284 = vunpack.c.l.b16 %v244
    %v285 = vunpack.c.l.b16 %v245
    %v286 = vunpack.c.l.b16 %v246
    %v287 = vunpack.c.l.b16 %v247
    %v288 = vunpack.c.l.b16 %v248
    %v289 = vunpack.c.l.b16 %v249
    %v290 = vunpack.c.l.b16 %v250
    %v291 = vunpack.c.l.b16 %v251
    %v292 = vunpack.c.l.b16 %v252
    %v293 = vunpack.c.l.b16 %v253
    %v294 = vunpack.c.l.b16 %v254
    %v295 = vunpack.c.l.b16 %v255
    %v296 = vunpack.c.l.b16 %v256
    %v297 = vunpack.c.l.b16 %v257
    %v298 = vunpack.c.l.b16 %v258
    %v299 = vpack.c.b16 %v284, %v283
    %v300 = vpack.c.b16 %v286, %v285
    %v301 = vpack.c.b16 %v288, %v287
    %v302 = vpack.c.b16 %v290, %v289
    %v303 = vpack.c.b16 %v292, %v291
    %v304 = vpack.c.b16 %v294, %v293
    %v305 = vpack.c.b16 %v296, %v295
    %v306 = vpack.c.b16 %v298, %v297
    %315 = vmatprep.subr.bf16.mxu0 0
    %316 = vmatpush1.bf16.msra.mxu0 %v299
    %317 = vmatprep.subr.bf16.mxu0 0
    %318 = vmatpush1.bf16.msra.mxu0 %v300
    %319 = vmatprep.subr.bf16.mxu0 0
    %320 = vmatpush1.bf16.msra.mxu0 %v301
    %321 = vmatprep.subr.bf16.mxu0 0
    %322 = vmatpush1.bf16.msra.mxu0 %v302
    %323 = vmatprep.subr.bf16.mxu0 0
    %324 = vmatpush1.bf16.msra.mxu0 %v303
    %325 = vmatprep.subr.bf16.mxu0 0
    %326 = vmatpush1.bf16.msra.mxu0 %v304
    %327 = vmatprep.subr.bf16.mxu0 0
    %328 = vmatpush1.bf16.msra.mxu0 %v305
    %329 = vmatprep.subr.bf16.mxu0 0
    %330 = vmatpush1.bf16.msra.mxu0 %v306
    %331 = vmatprep.subr.bf16.mxu0 0
    %332 = vmatpush1.bf16.msra.mxu0 0
    %333 = vmatprep.subr.bf16.mxu0 0
    %334 = vmatpush1.bf16.msra.mxu0 0
    %335 = vmatprep.subr.bf16.mxu0 0
    %336 = vmatpush1.bf16.msra.mxu0 0
    %337 = vmatprep.subr.bf16.mxu0 0
    %338 = vmatpush1.bf16.msra.mxu0 0
    %339 = vmatprep.subr.bf16.mxu0 0
    %340 = vmatpush1.bf16.msra.mxu0 0
    %341 = vmatprep.subr.bf16.mxu0 0
    %342 = vmatpush1.bf16.msra.mxu0 0
    %343 = vmatprep.subr.bf16.mxu0 0
    %344 = vmatpush1.bf16.msra.mxu0 0
    %345 = vmatprep.subr.bf16.mxu0 0
    %346 = vmatpush1.bf16.msra.mxu0 0
    %347 = vmatprep.mubr.bf16.mxu0 0
    %348 = vmatmul.mubr.bf16.gmra.mrb[0].mxu0 %v241
    %v349 = vpop.f32.mrb[0].mxu0
    %v350 = vadd.f32 %v265, %v349
    %v351 = vpop.f32.mrb[0].mxu0
    %v352 = vpop.f32.mrb[0].mxu0
    %v353 = vadd.f32 %v265, %v352
    %v354 = vpop.f32.mrb[0].mxu0
    %355 = vdwg.mxu0
    %v356 = vmax.f32 %v350, 0.0
    %v357 = vmax.f32 %v353, 0.0
    %v358 = vpack.c.bf16 %v357, %v356
    %s359 = scalar_lea.vmem [#allocation7], 128
    %v360 = vld [vmem:[%s359] sm:$0xf]
    %v361 = vld [vmem:[%s359 + $0x4] sm:$0xf]
    %v362 = vld [vmem:[%s359 + $0x8] sm:$0xf]
    %v363 = vld [vmem:[%s359 + $0xc] sm:$0xf]
    %v364 = vld [vmem:[%s359 + $0x10] sm:$0xf]
    %v365 = vld [vmem:[%s359 + $0x14] sm:$0xf]
    %v366 = vld [vmem:[%s359 + $0x18] sm:$0xf]
    %v367 = vld [vmem:[%s359 + $0x1c] sm:$0xf]
    %v368 = vld [vmem:[%s359 + $0x20] sm:$0xf]
    %v369 = vld [vmem:[%s359 + $0x24] sm:$0xf]
    %v370 = vld [vmem:[%s359 + $0x28] sm:$0xf]
    %v371 = vld [vmem:[%s359 + $0x2c] sm:$0xf]
    %v372 = vld [vmem:[%s359 + $0x30] sm:$0xf]
    %v373 = vld [vmem:[%s359 + $0x34] sm:$0xf]
    %v374 = vld [vmem:[%s359 + $0x38] sm:$0xf]
    %v375 = vld [vmem:[%s359 + $0x3c] sm:$0xf]
    %s376 = scalar_lea.vmem %s3, 3
    %v377 = vld [vmem:[%s376] sm:$0x1]
    %v379 = vlaneseq
    %v380 = vshrl.u32 %v379, 7
    %v381 = vsub.s32 0, %v380
    %v382 = vrot.slane %v377, %v381
    %v400 = vunpack.c.l.b16 %v360
    %v401 = vunpack.c.l.b16 %v361
    %v402 = vunpack.c.l.b16 %v362
    %v403 = vunpack.c.l.b16 %v363
    %v404 = vunpack.c.l.b16 %v364
    %v405 = vunpack.c.l.b16 %v365
    %v406 = vunpack.c.l.b16 %v366
    %v407 = vunpack.c.l.b16 %v367
    %v408 = vunpack.c.l.b16 %v368
    %v409 = vunpack.c.l.b16 %v369
    %v410 = vunpack.c.l.b16 %v370
    %v411 = vunpack.c.l.b16 %v371
    %v412 = vunpack.c.l.b16 %v372
    %v413 = vunpack.c.l.b16 %v373
    %v414 = vunpack.c.l.b16 %v374
    %v415 = vunpack.c.l.b16 %v375
    %v416 = vpack.c.b16 %v401, %v400
    %v417 = vpack.c.b16 %v403, %v402
    %v418 = vpack.c.b16 %v405, %v404
    %v419 = vpack.c.b16 %v407, %v406
    %v420 = vpack.c.b16 %v409, %v408
    %v421 = vpack.c.b16 %v411, %v410
    %v422 = vpack.c.b16 %v413, %v412
    %v423 = vpack.c.b16 %v415, %v414
    %432 = vmatprep.subr.bf16.mxu0 0
    %433 = vmatpush1.bf16.msra.mxu0 %v416
    %434 = vmatprep.subr.bf16.mxu0 0
    %435 = vmatpush1.bf16.msra.mxu0 %v417
    %436 = vmatprep.subr.bf16.mxu0 0
    %437 = vmatpush1.bf16.msra.mxu0 %v418
    %438 = vmatprep.subr.bf16.mxu0 0
    %439 = vmatpush1.bf16.msra.mxu0 %v419
    %440 = vmatprep.subr.bf16.mxu0 0
    %441 = vmatpush1.bf16.msra.mxu0 %v420
    %442 = vmatprep.subr.bf16.mxu0 0
    %443 = vmatpush1.bf16.msra.mxu0 %v421
    %444 = vmatprep.subr.bf16.mxu0 0
    %445 = vmatpush1.bf16.msra.mxu0 %v422
    %446 = vmatprep.subr.bf16.mxu0 0
    %447 = vmatpush1.bf16.msra.mxu0 %v423
    %448 = vmatprep.subr.bf16.mxu0 0
    %449 = vmatpush1.bf16.msra.mxu0 0
    %450 = vmatprep.subr.bf16.mxu0 0
    %451 = vmatpush1.bf16.msra.mxu0 0
    %452 = vmatprep.subr.bf16.mxu0 0
    %453 = vmatpush1.bf16.msra.mxu0 0
    %454 = vmatprep.subr.bf16.mxu0 0
    %455 = vmatpush1.bf16.msra.mxu0 0
    %456 = vmatprep.subr.bf16.mxu0 0
    %457 = vmatpush1.bf16.msra.mxu0 0
    %458 = vmatprep.subr.bf16.mxu0 0
    %459 = vmatpush1.bf16.msra.mxu0 0
    %460 = vmatprep.subr.bf16.mxu0 0
    %461 = vmatpush1.bf16.msra.mxu0 0
    %462 = vmatprep.subr.bf16.mxu0 0
    %463 = vmatpush1.bf16.msra.mxu0 0
    %464 = vmatprep.mubr.bf16.mxu0 0
    %465 = vmatmul.mubr.bf16.gmra.mrb[0].mxu0 %v358
    %v466 = vpop.f32.mrb[0].mxu0
    %v467 = vadd.f32 %v382, %v466
    %v468 = vpop.f32.mrb[0].mxu0
    %v469 = vpop.f32.mrb[0].mxu0
    %v470 = vadd.f32 %v382, %v469
    %v471 = vpop.f32.mrb[0].mxu0
    %472 = vdwg.mxu0
    %v473 = vtanh.pop %v467
    %v474 = vtanh.pop %v470
    %v475 = vmul.f32 %v473, 2.0
    %v476 = vmul.f32 %v474, 2.0
    %477 = vst [vmem:[#allocation8] sm:$0xff] %v475
    %478 = vst [vmem:[#allocation8 + $0x8] sm:$0xff] %v476
    // Predicated region
    $region30: #{tpu_custom_call.1} parent=1 // pred_check
      _
    $region31: #{tpu_custom_call.1} parent=1 // pred_check_branch
      %480 = sbr.rel (0) target = $region33
    $region32: #{tpu_custom_call.1} parent=1 // pred_region
      %s482 = ssub.s32 256, 256
      %483 = vsyncadd [#allocation4], %s482
      %s484 = sshll.u32 [#allocation8], 4
      %s485 = int_to_ptr.vmem [resolvable:$true] %s484
      %490 = dma.vmem_to_hbm [thread:$0]  %s485, 256, %s4, [#allocation4], 128, 128, 8
    $region33: #{tpu_custom_call.1} parent=1 // pred_fallthru
      _
    // Predicated region
    $region34: #{tpu_custom_call.1} parent=1 // pred_check
      _
    $region35: #{tpu_custom_call.1} parent=1 // pred_check_branch
      %492 = sbr.rel (0) target = $region37
    $region36: #{tpu_custom_call.1} parent=1 // pred_region
      %493 = dma.done [#allocation4], 256
    $region37: #{tpu_custom_call.1} parent=1 // pred_fallthru
      _
    %494 = vsyncpa [#allocation3], 1
    %495 = vsyncpa [#allocation6], 1
    %496 = vsyncpa [#allocation4], 1

</llo_original>
